<compile_context>
chip_gen: v7x
topology: tpu7x:2x2x1
jax: 0.10.0
libtpu: 0.0.40
codegen_flags: <defaults>
</compile_context>

<pallas_src>
import jax
import jax.numpy as jnp
from jax.experimental import pallas as pl
from jax.experimental.pallas import tpu as pltpu

_LANE = 128
_MAX_BLOCK_BYTES = 2 << 20  # ~2 MiB per block buffer; 4 pipelined buffers <= ~8 MiB VMEM


def _identity_kernel(x_ref, o_ref):
    # Whole-tile copy: dense vld/vst, no shuffles, no temporaries.
    o_ref[...] = x_ref[...]


def _sublane_multiple(dtype) -> int:
    # Sub-32-bit dtypes pack along sublanes; keep row blocks a multiple of the
    # packed sublane group so layouts stay native.
    itemsize = int(jnp.dtype(dtype).itemsize)
    return max(8, 32 // max(itemsize, 1))


def _round_up(n: int, m: int) -> int:
    return ((n + m - 1) // m) * m


def _copy_2d(x2):
    """Tiled identity copy of a 2-D array (lane dim last) through VMEM."""
    rows, cols = int(x2.shape[0]), int(x2.shape[1])
    itemsize = int(jnp.dtype(x2.dtype).itemsize)
    sub = _sublane_multiple(x2.dtype)

    # ---- column (lane) blocking -------------------------------------------
    # Either the full extent (always a legal block dim, even if ragged) or a
    # 128-multiple chunk small enough that `sub` rows of it fit the budget.
    if cols <= _LANE or cols * itemsize * sub <= _MAX_BLOCK_BYTES:
        block_cols = cols
    else:
        block_cols = max(_LANE, (_MAX_BLOCK_BYTES // (sub * itemsize)) // _LANE * _LANE)

    # ---- row (sublane) blocking, byte-budgeted ------------------------------
    row_bytes = block_cols * itemsize
    budget_rows = max(sub, (_MAX_BLOCK_BYTES // row_bytes) // sub * sub)
    num_row_blocks = pl.cdiv(rows, budget_rows)
    # Give v7x's two TensorCores something to split when the copy is big enough
    # to be worth it (no effect on single-TC v5e/v6e).
    if num_row_blocks == 1 and rows >= 2 * sub and rows * row_bytes >= (1 << 20):
        num_row_blocks = 2
    block_rows = _round_up(pl.cdiv(rows, num_row_blocks), sub)
    if block_rows >= rows:
        block_rows = rows  # full extent: always legal, no masking at all

    grid = (pl.cdiv(rows, block_rows), pl.cdiv(cols, block_cols))

    return pl.pallas_call(
        _identity_kernel,
        out_shape=jax.ShapeDtypeStruct((rows, cols), x2.dtype),
        grid=grid,
        in_specs=[pl.BlockSpec((block_rows, block_cols), lambda i, j: (i, j))],
        out_specs=pl.BlockSpec((block_rows, block_cols), lambda i, j: (i, j)),
        # Identity: output may reuse the input buffer (no extra HBM allocation;
        # in-place under jit with donation).
        input_output_aliases={0: 0},
        cost_estimate=pl.CostEstimate(
            flops=0,
            transcendentals=0,
            bytes_accessed=2 * rows * cols * itemsize,
        ),
        compiler_params=pltpu.CompilerParams(
            dimension_semantics=("parallel", "parallel"),
        ),
    )(x2)


def placeholder_forward(x):
    """Equivalent of PlaceHolder.forward(x): returns x (one Pallas identity copy)."""
    if x.ndim == 0 or x.size == 0:
        # Nothing to tile; the module is a pure pass-through.
        return x

    orig_shape = x.shape
    total = int(x.size)

    if total % _LANE == 0:
        # Lane-dense view: every store is a full, unmasked 128-lane vst.
        x2 = x.reshape(total // _LANE, _LANE)
    else:
        # Ragged total: keep the native trailing dim as the lane dim and let
        # Pallas mask the partial edge blocks — no host-side pad/slice passes.
        if x.ndim >= 2:
            x2 = x.reshape(total // int(orig_shape[-1]), int(orig_shape[-1]))
        else:
            x2 = x.reshape(1, total)

    out2 = _copy_2d(x2)
    return out2.reshape(orig_shape)


if __name__ == "__main__":
    key = jax.random.PRNGKey(0)

    # Small NCHW tensor consistent with the module (it accepts any tensor).
    N, C, H, W = 2, 4, 16, 16
    x = jax.random.normal(key, (N, C, H, W), dtype=jnp.float32)
    out = jax.block_until_ready(placeholder_forward(x))
    assert out.shape == x.shape and out.dtype == x.dtype
    assert bool(jnp.array_equal(out, x))

    # Non-128-aligned total + bf16 exercises the pad-free ragged path and
    # dtype preservation (no upcast anywhere).
    xb = jax.random.normal(jax.random.PRNGKey(1), (3, 5, 7, 9), dtype=jnp.bfloat16)
    outb = jax.block_until_ready(placeholder_forward(xb))
    assert outb.shape == xb.shape and outb.dtype == xb.dtype
    assert bool(jnp.array_equal(outb, xb))

    print("KERNEL_OK")
</pallas_src>

<mosaic_0001>
module attributes {stable_mosaic.version = 11 : i64} {
  func.func @_identity_kernel(%arg0: i32, %arg1: i32, %arg2: memref<16x128xf32, #tpu.memory_space<vmem>>, %arg3: memref<16x128xf32, #tpu.memory_space<vmem>>) attributes {dimension_semantics = [#tpu.dimension_semantics<parallel>, #tpu.dimension_semantics<parallel>], iteration_bounds = array<i64: 1, 1>, scalar_prefetch = 0 : i64, scratch_operands = 0 : i64, tpu.core_type = #tpu.core_type<tc>, window_params = [{transform_indices = @transform_0, window_bounds = array<i64: 16, 128>}, {transform_indices = @transform_1, window_bounds = array<i64: 16, 128>}]} {
    %c0 = arith.constant 0 : index
    %c0_0 = arith.constant 0 : index
    %0 = vector.load %arg2[%c0, %c0_0] : memref<16x128xf32, #tpu.memory_space<vmem>>, vector<16x128xf32>
    %c0_1 = arith.constant 0 : index
    %c0_2 = arith.constant 0 : index
    %1 = vector.load %arg3[%c0_1, %c0_2] : memref<16x128xf32, #tpu.memory_space<vmem>>, vector<16x128xf32>
    tpu.vector_store %arg3[%c0_1, %c0_2], %0 {strides = array<i32>} : memref<16x128xf32, #tpu.memory_space<vmem>>, vector<16x128xf32>,
    return
  }
  func.func @transform_0(%arg0: i32, %arg1: i32) -> (i32, i32) {
    %c0_i32 = arith.constant 0 : i32
    return %arg0, %arg1 : i32, i32
  }
  func.func @transform_1(%arg0: i32, %arg1: i32) -> (i32, i32) {
    %c0_i32 = arith.constant 0 : i32
    return %arg0, %arg1 : i32, i32
  }
}

</mosaic_0001>

<llo_original>
// kernel: tpu_custom_call.1
$region0: #{tpu_custom_call.1}
  #allocation0 [shape = 'u32[]', space=smem, size = 0x4, offset = 0x4, fixed_abs, tag = 'smem constant byte address 0x4 - core index']
  #allocation1 [shape = 'u32[144,128]{1,0:T(1,128)}', space=vmem, size = 0x12000, scoped, tag = 'internal scratch']
  %s0 = inlined_call_operand.hbm [shape: f32[16,128], index: 0, kind: input, shape index: {}, may-alias: {0,1}]
  %s1 = inlined_call_operand.hbm [shape: f32[16,128], index: 1, kind: output, shape index: {}, may-alias: {0,1}]
  %s2 = sld [smem:[#allocation0]]
  $region18: #{tpu_custom_call.1} parent=0
    _
  %s4 = ssub.s32 1, %s2
  %s5 = scalar_select 0, %s4, %s2
  $region1: #{tpu_custom_call.1} parent=0
    #allocation2 [shape = 'u8[8192]{0}', space=vmem, size = 0x2000, scoped, tag = 'input window, operand 0, single buffered']
    #allocation3 [shape = 's32[1]{0}', space=sflag, size = 0x4, scoped, tag = 'scoped memory for tpu_custom_call.1']
    #allocation4 [shape = 's32[1]{0}', space=sflag, size = 0x4, scoped, tag = 'scoped memory for tpu_custom_call.1']
    #allocation5 [shape = 'u8[8192]{0}', space=vmem, size = 0x2000, scoped, tag = 'output window, operand 0, single buffered']
    %6 = vsyncpa [#allocation3], 0
    %7 = vsyncpa [#allocation4], 0
    // Predicated region
    $region2: #{tpu_custom_call.1} parent=1 // pred_check
      _
    $region3: #{tpu_custom_call.1} parent=1 // pred_check_branch
      %9 = sbr.rel (0) target = $region5
    $region4: #{tpu_custom_call.1} parent=1 // pred_region
      %s11 = ssub.s32 256, 256
      %12 = vsyncadd [#allocation3], %s11
      %s13 = sshll.u32 [#allocation2], 4
      %s14 = int_to_ptr.vmem [resolvable:$true] %s13
      %19 = dma.hbm_to_vmem [thread:$0]  %s0, 256, %s14, [#allocation3], 128, 128, 8
    $region5: #{tpu_custom_call.1} parent=1 // pred_fallthru
      _
    // Predicated region
    $region6: #{tpu_custom_call.1} parent=1 // pred_check
      _
    $region7: #{tpu_custom_call.1} parent=1 // pred_check_branch
      %21 = sbr.rel (0) target = $region9
    $region8: #{tpu_custom_call.1} parent=1 // pred_region
      %22 = dma.done [#allocation3], 256
    $region9: #{tpu_custom_call.1} parent=1 // pred_fallthru
      _
    %v23 = vld [vmem:[#allocation2] sm:$0xff]
    %v24 = vld [vmem:[#allocation2 + $0x8] sm:$0xff]
    %25 = vst [vmem:[#allocation5] sm:$0xff] %v23
    %26 = vst [vmem:[#allocation5 + $0x8] sm:$0xff] %v24
    // Predicated region
    $region10: #{tpu_custom_call.1} parent=1 // pred_check
      _
    $region11: #{tpu_custom_call.1} parent=1 // pred_check_branch
      %28 = sbr.rel (0) target = $region13
    $region12: #{tpu_custom_call.1} parent=1 // pred_region
      %s30 = ssub.s32 256, 256
      %31 = vsyncadd [#allocation4], %s30
      %s32 = sshll.u32 [#allocation5], 4
      %s33 = int_to_ptr.vmem [resolvable:$true] %s32
      %38 = dma.vmem_to_hbm [thread:$0]  %s33, 256, %s1, [#allocation4], 128, 128, 8
    $region13: #{tpu_custom_call.1} parent=1 // pred_fallthru
      _
    // Predicated region
    $region14: #{tpu_custom_call.1} parent=1 // pred_check
      _
    $region15: #{tpu_custom_call.1} parent=1 // pred_check_branch
      %40 = sbr.rel (0) target = $region17
    $region16: #{tpu_custom_call.1} parent=1 // pred_region
      %41 = dma.done [#allocation4], 256
    $region17: #{tpu_custom_call.1} parent=1 // pred_fallthru
      _
    %42 = vsyncpa [#allocation3], 1
    %43 = vsyncpa [#allocation4], 1

</llo_original>
